<compile_context>
chip_gen: v7x
topology: tpu7x:2x2x1
jax: 0.10.0
libtpu: 0.0.40
codegen_flags: <defaults>
</compile_context>

<pallas_src>
import jax
import jax.numpy as jnp
from jax.experimental import pallas as pl
from jax.experimental.pallas import tpu as pltpu

D_IN = 64        # cfg.share.dim_node_in (sine positional feature width)
EMBED_DIM = 32   # embed_dim
PACK = 4         # rows folded together for the lane-dense path (64*4=256, 32*4=128)


def _round_up(n, m):
    return ((n + m - 1) // m) * m


def _linear_kernel(x_ref, w_ref, b_ref, o_ref):
    # x: [tm, K], w: [K, D], b: [1, D] -> o: [tm, D]; f32 accumulation on the MXU.
    y = jnp.dot(x_ref[...], w_ref[...], preferred_element_type=jnp.float32)
    o_ref[...] = (y + b_ref[...]).astype(o_ref.dtype)


def _pick_tm(n_rows, max_rows):
    """Row-tile size: big enough to amortize step overhead, >=2 steps for v7x megacore."""
    tm = max(8, min(max_rows, _round_up(n_rows, 8)))
    # Keep at least 2 grid steps when there is more than one vreg-row of work,
    # so v7x's 2 TensorCores both stream HBM (review item).
    if n_rows > 8 and pl.cdiv(n_rows, tm) < 2:
        tm = max(8, _round_up(pl.cdiv(n_rows, 2), 8))
    return tm


def _pallas_linear(x2d, w2d, b2d, *, tm):
    """Row-tiled x2d @ w2d + b2d with a ragged (clipped) edge block, no padding."""
    n_rows, k = x2d.shape
    d_out = w2d.shape[1]
    grid = pl.cdiv(n_rows, tm)

    out_bytes = n_rows * d_out * 4
    cost = pl.CostEstimate(
        flops=2 * n_rows * k * d_out,
        transcendentals=0,
        bytes_accessed=x2d.size * x2d.dtype.itemsize
        + w2d.size * w2d.dtype.itemsize
        + b2d.size * b2d.dtype.itemsize
        + out_bytes,
    )

    return pl.pallas_call(
        _linear_kernel,
        out_shape=jax.ShapeDtypeStruct((n_rows, d_out), jnp.float32),
        grid_spec=pltpu.PrefetchScalarGridSpec(
            num_scalar_prefetch=0,
            grid=(grid,),
            in_specs=[
                pl.BlockSpec((tm, k), lambda i: (i, 0)),       # x tile (pipelined)
                pl.BlockSpec((k, d_out), lambda i: (0, 0)),    # W, resident in VMEM
                pl.BlockSpec((1, d_out), lambda i: (0, 0)),    # b, resident in VMEM
            ],
            out_specs=pl.BlockSpec((tm, d_out), lambda i: (i, 0)),
        ),
        compiler_params=pltpu.CompilerParams(
            dimension_semantics=("parallel",)),
        cost_estimate=cost,
    )(x2d, w2d, b2d)


def sine_pos_node_encoder(x, w, b, *, block_rows=8192, min_pallas_rows=2048,
                          compute_dtype=None):
    """Forward: batch.x = Linear(x).

    x: [N, D_in] f32, w: [D_in, D_out] f32, b: [1, D_out] f32 -> [N, D_out] f32.
    block_rows: row-tile size in *original* rows (multiple of 8; ~768 B/row
      double-buffered, so 8192 rows ~ 6 MiB — safe on v5e 16 MiB scoped VMEM and
      v7x 32 MiB-scoped / 64 MiB-physical VMEM without raising vmem_limit_bytes).
    compute_dtype: optionally jnp.bfloat16 to halve the dominant HBM read bytes
      (f32 accumulation is kept inside the kernel).
    """
    n, d_in = x.shape
    d_out = w.shape[1]

    # Small batches: a single fused XLA GEMM beats pallas_call launch + step overhead.
    if n < min_pallas_rows:
        return (x @ w + b).astype(jnp.float32)

    if compute_dtype is not None:
        x = x.astype(compute_dtype)
        w = w.astype(compute_dtype)

    lane_dense_ok = (n % PACK == 0) and (PACK * d_out) % 128 == 0 and (PACK * d_in) % 128 == 0
    if lane_dense_ok:
        # Lane-dense repack: [N,64] -> [N/4,256]; W -> blockdiag(W,W,W,W) [256,128];
        # b -> [1,128].  Output [N/4,128] views back to [N,32].
        xp = x.reshape(n // PACK, PACK * d_in)
        w_blk = jnp.kron(jnp.eye(PACK, dtype=w.dtype), w)          # [256, 128]
        b_blk = jnp.tile(b.reshape(1, d_out), (1, PACK))           # [1, 128]
        n_rows = n // PACK
        tm = _pick_tm(n_rows, max(8, block_rows // PACK))
        out = _pallas_linear(xp, w_blk, b_blk, tm=tm)
        return out.reshape(n, d_out)

    # Fallback (N not a multiple of PACK): unpacked, lane-sparse but still un-padded
    # and ragged-clipped.  # TODO(synk): could route the bulk multiple-of-4 rows
    # through the lane-dense path and only the <=3 tail rows through XLA.
    tm = _pick_tm(n, block_rows)
    return _pallas_linear(x, w, b.reshape(1, d_out), tm=tm)


def init_params(key):
    """PyTorch nn.Linear default init (kaiming_uniform(a=sqrt(5)) weight, uniform bias),
    stored as W [in, out] for row-major matmul."""
    kw, kb = jax.random.split(key)
    bound = 1.0 / jnp.sqrt(D_IN)
    w = jax.random.uniform(kw, (D_IN, EMBED_DIM), jnp.float32, -bound, bound)
    b = jax.random.uniform(kb, (1, EMBED_DIM), jnp.float32, -bound, bound)
    return w, b


def reference_forward(x, w, b):
    """Pure-JAX reference of the PyTorch forward (batch.x = Linear(batch.x))."""
    return x @ w + b


if __name__ == "__main__":
    key = jax.random.PRNGKey(0)
    k_x, k_p = jax.random.split(key)
    w, b = init_params(k_p)

    ok = True

    # 1) Lane-dense packed Pallas path (N % 4 == 0), ragged edge block + 2 grid steps.
    x1 = jax.random.normal(k_x, (200, D_IN), jnp.float32)
    out1 = jax.block_until_ready(sine_pos_node_encoder(x1, w, b, min_pallas_rows=0))
    ok &= out1.shape == (200, EMBED_DIM)
    ok &= bool(jnp.allclose(out1, reference_forward(x1, w, b), atol=1e-4, rtol=1e-4))

    # 2) Fallback unpacked Pallas path (N % 4 != 0), ragged edge block, no padding.
    x2 = jax.random.normal(jax.random.fold_in(k_x, 1), (130, D_IN), jnp.float32)
    out2 = jax.block_until_ready(sine_pos_node_encoder(x2, w, b, min_pallas_rows=0))
    ok &= out2.shape == (130, EMBED_DIM)
    ok &= bool(jnp.allclose(out2, reference_forward(x2, w, b), atol=1e-4, rtol=1e-4))

    # 3) Small-N gate: goes through the fused XLA GEMM path.
    x3 = jax.random.normal(jax.random.fold_in(k_x, 2), (16, D_IN), jnp.float32)
    out3 = jax.block_until_ready(sine_pos_node_encoder(x3, w, b))
    ok &= bool(jnp.allclose(out3, reference_forward(x3, w, b), atol=1e-4, rtol=1e-4))

    assert ok, "mismatch vs reference"
    print("KERNEL_OK")
</pallas_src>

<mosaic_0001>
module attributes {stable_mosaic.version = 11 : i64} {
  func.func @_linear_kernel(%arg0: i32, %arg1: memref<32x256xf32, #tpu.memory_space<vmem>>, %arg2: memref<256x128xf32, #tpu.memory_space<vmem>>, %arg3: memref<1x128xf32, #tpu.memory_space<vmem>>, %arg4: memref<32x128xf32, #tpu.memory_space<vmem>>) attributes {dimension_semantics = [#tpu.dimension_semantics<parallel>], iteration_bounds = array<i64: 2>, scalar_prefetch = 0 : i64, scratch_operands = 0 : i64, tpu.core_type = #tpu.core_type<tc>, window_params = [{transform_indices = @transform_0, window_bounds = array<i64: 32, 256>}, {pipeline_mode = #tpu.pipeline_mode<synchronous>, transform_indices = @transform_1, window_bounds = array<i64: 256, 128>}, {pipeline_mode = #tpu.pipeline_mode<synchronous>, transform_indices = @transform_2, window_bounds = array<i64: 1, 128>}, {transform_indices = @transform_3, window_bounds = array<i64: 32, 128>}]} {
    %c0 = arith.constant 0 : index
    %c0_0 = arith.constant 0 : index
    %0 = vector.load %arg1[%c0, %c0_0] : memref<32x256xf32, #tpu.memory_space<vmem>>, vector<32x256xf32>
    %c0_1 = arith.constant 0 : index
    %c0_2 = arith.constant 0 : index
    %1 = vector.load %arg2[%c0_1, %c0_2] : memref<256x128xf32, #tpu.memory_space<vmem>>, vector<256x128xf32>
    %cst = arith.constant dense<0.000000e+00> : vector<32x128xf32>
    %2 = tpu.matmul %0, %1, %cst {dimension_numbers = #tpu.dot_dimension_numbers<[1], [0], [0], [1], [0, 0, 1, 1], [], []>} : vector<32x256xf32>, vector<256x128xf32>, vector<32x128xf32> -> vector<32x128xf32>
    %c0_3 = arith.constant 0 : index
    %c0_4 = arith.constant 0 : index
    %3 = vector.load %arg3[%c0_3, %c0_4] : memref<1x128xf32, #tpu.memory_space<vmem>>, vector<1x128xf32>
    %4 = vector.broadcast %3 : vector<1x128xf32> to vector<32x128xf32>
    %5 = arith.addf %2, %4 : vector<32x128xf32>
    %c0_5 = arith.constant 0 : index
    %c0_6 = arith.constant 0 : index
    %6 = vector.load %arg4[%c0_5, %c0_6] : memref<32x128xf32, #tpu.memory_space<vmem>>, vector<32x128xf32>
    tpu.vector_store %arg4[%c0_5, %c0_6], %5 {strides = array<i32>} : memref<32x128xf32, #tpu.memory_space<vmem>>, vector<32x128xf32>,
    return
  }
  func.func @transform_0(%arg0: i32) -> (i32, i32) {
    %c0_i32 = arith.constant 0 : i32
    %c0_i32_0 = arith.constant 0 : i32
    return %arg0, %c0_i32 : i32, i32
  }
  func.func @transform_1(%arg0: i32) -> (i32, i32) {
    %c0_i32 = arith.constant 0 : i32
    %c0_i32_0 = arith.constant 0 : i32
    %c0_i32_1 = arith.constant 0 : i32
    return %c0_i32, %c0_i32_0 : i32, i32
  }
  func.func @transform_2(%arg0: i32) -> (i32, i32) {
    %c0_i32 = arith.constant 0 : i32
    %c0_i32_0 = arith.constant 0 : i32
    %c0_i32_1 = arith.constant 0 : i32
    return %c0_i32, %c0_i32_0 : i32, i32
  }
  func.func @transform_3(%arg0: i32) -> (i32, i32) {
    %c0_i32 = arith.constant 0 : i32
    %c0_i32_0 = arith.constant 0 : i32
    return %arg0, %c0_i32 : i32, i32
  }
}

</mosaic_0001>

<llo_original>
// kernel: tpu_custom_call.1
$region0: #{tpu_custom_call.1}
  #allocation0 [shape = 'u32[]', space=smem, size = 0x4, offset = 0x4, fixed_abs, tag = 'smem constant byte address 0x4 - core index']
  #allocation1 [shape = 'u32[144,128]{1,0:T(1,128)}', space=vmem, size = 0x12000, scoped, tag = 'internal scratch']
  %s0 = inlined_call_operand.hbm [shape: f32[50,256], index: 0, kind: input, shape index: {}]
  %s1 = inlined_call_operand.hbm [shape: f32[256,128], index: 1, kind: input, shape index: {}]
  %s2 = inlined_call_operand.vmem [shape: f32[1,128], index: 2, kind: input, shape index: {}]
  %s3 = inlined_call_operand.hbm [shape: f32[50,128], index: 3, kind: output, shape index: {}]
  %s4 = sld [smem:[#allocation0]]
  $region53: #{tpu_custom_call.1} parent=0
    _
  %s6 = ssub.s32 1, %s4
  %s7 = scalar_select 0, %s6, %s4
  $region1: #{tpu_custom_call.1} parent=0
    #allocation2 [shape = 'u8[65536]{0}', space=vmem, size = 0x10000, scoped, tag = 'input window, operand 0']
    #allocation3 [shape = 's32[2]{0}', space=sflag, size = 0x8, scoped, tag = 'scoped memory for tpu_custom_call.1']
    #allocation4 [shape = 's32[2]{0}', space=sflag, size = 0x8, scoped, tag = 'scoped memory for tpu_custom_call.1']
    #allocation5 [shape = 'u8[131072]{0}', space=vmem, size = 0x20000, scoped, tag = 'input window, operand 1, single buffered']
    #allocation6 [shape = 's32[1]{0}', space=sflag, size = 0x4, scoped, tag = 'scoped memory for tpu_custom_call.1']
    #allocation7 [shape = 'u8[32768]{0}', space=vmem, size = 0x8000, scoped, tag = 'output window, operand 0']
    %8 = vsyncpa [#allocation3], 0
    %s9 = scalar_lea.sflag [#allocation3], 1
    %10 = vsyncpa %s9, 0
    %11 = vsyncpa [#allocation6], 0
    %12 = vsyncpa [#allocation4], 0
    %s13 = scalar_lea.sflag [#allocation4], 1
    %14 = vsyncpa %s13, 0
    loop: start=0, step=1, limit=4
    $region2: #{tpu_custom_call.1} parent=1 // loop_pre_header
      _
    $region3: #{tpu_custom_call.1} parent=1 // loop_header
      %s16 = sphi 0, %s20
      %p17 = scmp.ge.s32.totalorder %s16, 4
      %s26 = sphi 0, %s28
      %s29 = sphi 0, %s26
      %s30 = sphi 0, %s29
      %s46 = sphi 0, %s30
      %s50 = sphi 0, %s50
      %s52 = sphi 0, %s50
      %s53 = sphi 0, %s52
      %s67 = sphi 0, %s53
      %s71 = sphi 0, %s71
      %s73 = sphi 0, %s71
      %s74 = sphi 0, %s73
      %s88 = sphi 0, %s74
      %s94 = sphi 0, %s96
      %s97 = sphi 0, %s94
      %s98 = sphi 0, %s97
      %s114 = sphi 0, %s98
    $region4: #{tpu_custom_call.1} parent=1 // loop_header_branch
      %19 = sbr.rel (%p17) target = $region8
    $region5: #{tpu_custom_call.1} parent=1 // loop_body
      %s21 = ssub.s32 %s16, 1
      %s22 = ssub.s32 %s16, 2
      %s23 = sadd.s32 %s16, 1
      %s24 = ssub.s32 %s16, %s23
      %p25 = scmp.eq.s32.totalorder %s24, 0
      %s27 = sadd.s32 %s26, 1
      %s28 = scalar_select %p25, %s26, %s27
      %p31 = pneg %p25
      %p32 = scmp.eq.s32.totalorder %s16, 1
      %p33 = por %p31, %p32
      %p34 = scmp.ne.s32.totalorder %s26, %s29
      %p35 = scmp.eq.s32.totalorder %s16, 0
      %p36 = por %p34, %p35
      %p37 = scmp.ne.s32.totalorder %s26, %s29
      %p38 = scmp.eq.s32.totalorder %s21, 1
      %p39 = por %p37, %p38
      %p40 = scmp.ne.s32.totalorder %s29, %s30
      %p41 = scmp.eq.s32.totalorder %s21, 0
      %p42 = por %p40, %p41
      %p43 = scmp.ne.s32.totalorder %s29, %s30
      %p44 = scmp.eq.s32.totalorder %s22, 1
      %p45 = por %p43, %p44
      %p47 = scmp.ne.s32.totalorder %s30, %s46
      %p48 = scmp.eq.s32.totalorder %s22, 0
      %p49 = por %p47, %p48
      %s51 = sadd.s32 %s50, 1
      %p54 = scmp.eq.s32.totalorder %s16, 1
      %p55 = scmp.ne.s32.totalorder %s50, %s52
      %p56 = scmp.eq.s32.totalorder %s16, 0
      %p57 = por %p55, %p56
      %p58 = scmp.ne.s32.totalorder %s50, %s52
      %p59 = scmp.eq.s32.totalorder %s21, 1
      %p60 = por %p58, %p59
      %p61 = scmp.ne.s32.totalorder %s52, %s53
      %p62 = scmp.eq.s32.totalorder %s21, 0
      %p63 = por %p61, %p62
      %p64 = scmp.ne.s32.totalorder %s52, %s53
      %p65 = scmp.eq.s32.totalorder %s22, 1
      %p66 = por %p64, %p65
      %p68 = scmp.ne.s32.totalorder %s53, %s67
      %p69 = scmp.eq.s32.totalorder %s22, 0
      %p70 = por %p68, %p69
      %s72 = sadd.s32 %s71, 1
      %p75 = scmp.eq.s32.totalorder %s16, 1
      %p76 = scmp.ne.s32.totalorder %s71, %s73
      %p77 = scmp.eq.s32.totalorder %s16, 0
      %p78 = por %p76, %p77
      %p79 = scmp.ne.s32.totalorder %s71, %s73
      %p80 = scmp.eq.s32.totalorder %s21, 1
      %p81 = por %p79, %p80
      %p82 = scmp.ne.s32.totalorder %s73, %s74
      %p83 = scmp.eq.s32.totalorder %s21, 0
      %p84 = por %p82, %p83
      %p85 = scmp.ne.s32.totalorder %s73, %s74
      %p86 = scmp.eq.s32.totalorder %s22, 1
      %p87 = por %p85, %p86
      %p89 = scmp.ne.s32.totalorder %s74, %s88
      %p90 = scmp.eq.s32.totalorder %s22, 0
      %p91 = por %p89, %p90
      %s92 = ssub.s32 %s16, %s23
      %p93 = scmp.eq.s32.totalorder %s92, 0
      %s95 = sadd.s32 %s94, 1
      %s96 = scalar_select %p93, %s94, %s95
      %p99 = pneg %p93
      %p100 = scmp.eq.s32.totalorder %s16, 1
      %p101 = por %p99, %p100
      %p102 = scmp.ne.s32.totalorder %s94, %s97
      %p103 = scmp.eq.s32.totalorder %s16, 0
      %p104 = por %p102, %p103
      %p105 = scmp.ne.s32.totalorder %s94, %s97
      %p106 = scmp.eq.s32.totalorder %s21, 1
      %p107 = por %p105, %p106
      %p108 = scmp.ne.s32.totalorder %s97, %s98
      %p109 = scmp.eq.s32.totalorder %s21, 0
      %p110 = por %p108, %p109
      %p111 = scmp.ne.s32.totalorder %s97, %s98
      %p112 = scmp.eq.s32.totalorder %s22, 1
      %p113 = por %p111, %p112
      %p115 = scmp.ne.s32.totalorder %s98, %s114
      %p116 = scmp.eq.s32.totalorder %s22, 0
      %p117 = por %p115, %p116
      %p118 = scmp.le.s32.totalorder 1, %s16
      %p119 = scmp.lt.s32.totalorder %s16, 3
      %p120 = pnand %p118, %p119
      %p121 = pneg %p120
      // Predicated region
      $region9: #{tpu_custom_call.1} parent=5 // pred_check
        _
      $region10: #{tpu_custom_call.1} parent=5 // pred_check_branch
        %123 = sbr.rel (%p120) target = $region12
      $region11: #{tpu_custom_call.1} parent=5 // pred_region
        %s124 = ssub.s32 %s16, 1
        // Predicated region
        $region13: #{tpu_custom_call.1} parent=11 // pred_check
          %p125 = pneg %p63
        $region14: #{tpu_custom_call.1} parent=11 // pred_check_branch
          %127 = sbr.rel (%p125) target = $region16
        $region15: #{tpu_custom_call.1} parent=11 // pred_region
          %s129 = ssub.s32 4096, 4096
          %130 = vsyncadd [#allocation6], %s129
          %s131 = sshll.u32 [#allocation5], 4
          %s132 = int_to_ptr.vmem [resolvable:$true] %s131
          %137 = dma.hbm_to_vmem [thread:$0]  %s1, 4096, %s132, [#allocation6], 128, 128, 8
        $region16: #{tpu_custom_call.1} parent=11 // pred_fallthru
          _
        // Predicated region
        $region17: #{tpu_custom_call.1} parent=11 // pred_check
          %p138 = pneg %p84
        $region18: #{tpu_custom_call.1} parent=11 // pred_check_branch
          %140 = sbr.rel (%p138) target = $region20
        $region19: #{tpu_custom_call.1} parent=11 // pred_region
          _
        $region20: #{tpu_custom_call.1} parent=11 // pred_fallthru
          _
      $region12: #{tpu_custom_call.1} parent=5 // pred_fallthru
        _
      %p141 = scmp.lt.s32.totalorder %s16, 2
      // Predicated region
      $region21: #{tpu_custom_call.1} parent=5 // pred_check
        %p142 = pneg %p141
      $region22: #{tpu_custom_call.1} parent=5 // pred_check_branch
        %144 = sbr.rel (%p142) target = $region24
      $region23: #{tpu_custom_call.1} parent=5 // pred_region
        // Predicated region
        $region25: #{tpu_custom_call.1} parent=23 // pred_check
          %p145 = pneg %p36
        $region26: #{tpu_custom_call.1} parent=23 // pred_check_branch
          %147 = sbr.rel (%p145) target = $region28
        $region27: #{tpu_custom_call.1} parent=23 // pred_region
          %s148 = sand.u32 %s26, 1
          %s149 = scalar_lea.sflag [#allocation3], %s148
          %s150 = sand.u32 %s26, 1
          %s151 = smul.addr %s150, 64
          %s152 = scalar_lea.vmem [#allocation2], %s151
          %s153 = smul.u32 4, %s16
          %s154 = ssub.s32 7, %s153
          %p155 = scmp.lt.s32.totalorder %s154, 4
          %s156 = scalar_select %p155, %s154, 4
          %s157 = smul.u32 128, %s156
          %s158 = smul.u32 %s157, 2
          %s160 = ssub.s32 1024, %s158
          %161 = vsyncadd %s149, %s160
          %p162 = scmp.ne.s32.totalorder 0, %s158
          %s163 = smul.addr %s153, 2
          %s164 = smul.addr %s163, 128
          %s165 = scalar_lea.hbm %s0, %s164
          %s166 = smul.u32 16, %s156
          %s167 = sshll.u32 %s152, 4
          %s168 = int_to_ptr.vmem [resolvable:$true] %s167
          %s169 = sshll.u32 %s166, 4
          %173 = dma.hbm_to_vmem [thread:$0]  (%p162), %s165, %s169, %s168, %s149, 256, 256, 16
        $region28: #{tpu_custom_call.1} parent=23 // pred_fallthru
          _
      $region24: #{tpu_custom_call.1} parent=5 // pred_fallthru
        _
      %p174 = scmp.le.s32.totalorder 1, %s16
      %p175 = scmp.lt.s32.totalorder %s16, 3
      %p176 = pnand %p174, %p175
      %p177 = pneg %p176
      // Predicated region
      $region29: #{tpu_custom_call.1} parent=5 // pred_check
        _
      $region30: #{tpu_custom_call.1} parent=5 // pred_check_branch
        %179 = sbr.rel (%p176) target = $region32
      $region31: #{tpu_custom_call.1} parent=5 // pred_region
        %s180 = ssub.s32 %s16, 1
        %s181 = sand.u32 %s29, 1
        %s182 = scalar_lea.sflag [#allocation3], %s181
        %s183 = sand.u32 %s29, 1
        %s184 = smul.addr %s183, 64
        %s185 = scalar_lea.vmem [#allocation2], %s184
        // Predicated region
        $region33: #{tpu_custom_call.1} parent=31 // pred_check
          %p186 = pneg %p42
        $region34: #{tpu_custom_call.1} parent=31 // pred_check_branch
          %188 = sbr.rel (%p186) target = $region36
        $region35: #{tpu_custom_call.1} parent=31 // pred_region
          %189 = dma.done %s182, 1024
        $region36: #{tpu_custom_call.1} parent=31 // pred_fallthru
          _
        // Predicated region
        $region37: #{tpu_custom_call.1} parent=31 // pred_check
          %p190 = pneg %p63
        $region38: #{tpu_custom_call.1} parent=31 // pred_check_branch
          %192 = sbr.rel (%p190) target = $region40
        $region39: #{tpu_custom_call.1} parent=31 // pred_region
          %193 = dma.done [#allocation6], 4096
        $region40: #{tpu_custom_call.1} parent=31 // pred_fallthru
          _
        %s194 = sand.u32 %s29, 1
        %s195 = scalar_lea.sflag [#allocation3], %s194
        %s196 = sand.u32 %s29, 1
        %s197 = smul.addr %s196, 64
        %s198 = scalar_lea.vmem [#allocation2], %s197
        %p199 = pneg %p42
        %p200 = pneg %p39
        %p201 = pneg %p63
        %p202 = pneg %p60
        %p203 = pneg %p84
        %p204 = pneg %p81
        %p205 = pneg %p110
        %p206 = pneg %p107
        %s207 = sand.u32 %s97, 1
        %s208 = scalar_lea.sflag [#allocation4], %s207
        %s209 = sand.u32 %s97, 1
        %s210 = smul.addr %s209, 32
        %s211 = scalar_lea.vmem [#allocation7], %s210
        %s212 = smul.u32 4, %s21
        %s213 = ssub.s32 7, %s212
        %p214 = scmp.lt.s32.totalorder %s213, 4
        %s215 = scalar_select %p214, %s213, 4
        %s216 = smul.u32 128, %s215
        %s217 = smul.u32 %s216, 2
        %s218 = smul.u32 4, %s21
        %s219 = ssub.s32 7, %s218
        %p220 = scmp.lt.s32.totalorder %s219, 4
        %s221 = scalar_select %p220, %s219, 4
        %s222 = smul.u32 128, %s221
        %v223 = vld [vmem:[%s185] sm:$0xff]
        %v224 = vld [vmem:[%s185 + $0x8] sm:$0xff]
        %v225 = vld [vmem:[%s185 + $0x10] sm:$0xff]
        %v226 = vld [vmem:[%s185 + $0x18] sm:$0xff]
        %v227 = vld [vmem:[%s185 + $0x20] sm:$0xff]
        %v228 = vld [vmem:[%s185 + $0x28] sm:$0xff]
        %v229 = vld [vmem:[%s185 + $0x30] sm:$0xff]
        %v230 = vld [vmem:[%s185 + $0x38] sm:$0xff]
        %v231 = vld [vmem:[#allocation5] sm:$0xff]
        %v232 = vld [vmem:[#allocation5 + $0x8] sm:$0xff]
        %v233 = vld [vmem:[#allocation5 + $0x10] sm:$0xff]
        %v234 = vld [vmem:[#allocation5 + $0x18] sm:$0xff]
        %v235 = vld [vmem:[#allocation5 + $0x20] sm:$0xff]
        %v236 = vld [vmem:[#allocation5 + $0x28] sm:$0xff]
        %v237 = vld [vmem:[#allocation5 + $0x30] sm:$0xff]
        %v238 = vld [vmem:[#allocation5 + $0x38] sm:$0xff]
        %v239 = vld [vmem:[#allocation5 + $0x40] sm:$0xff]
        %v240 = vld [vmem:[#allocation5 + $0x48] sm:$0xff]
        %v241 = vld [vmem:[#allocation5 + $0x50] sm:$0xff]
        %v242 = vld [vmem:[#allocation5 + $0x58] sm:$0xff]
        %v243 = vld [vmem:[#allocation5 + $0x60] sm:$0xff]
        %v244 = vld [vmem:[#allocation5 + $0x68] sm:$0xff]
        %v245 = vld [vmem:[#allocation5 + $0x70] sm:$0xff]
        %v246 = vld [vmem:[#allocation5 + $0x78] sm:$0xff]
        %v247 = vld [vmem:[#allocation5 + $0x80] sm:$0xff]
        %v248 = vld [vmem:[#allocation5 + $0x88] sm:$0xff]
        %v249 = vld [vmem:[#allocation5 + $0x90] sm:$0xff]
        %v250 = vld [vmem:[#allocation5 + $0x98] sm:$0xff]
        %v251 = vld [vmem:[#allocation5 + $0xa0] sm:$0xff]
        %v252 = vld [vmem:[#allocation5 + $0xa8] sm:$0xff]
        %v253 = vld [vmem:[#allocation5 + $0xb0] sm:$0xff]
        %v254 = vld [vmem:[#allocation5 + $0xb8] sm:$0xff]
        %v255 = vld [vmem:[#allocation5 + $0xc0] sm:$0xff]
        %v256 = vld [vmem:[#allocation5 + $0xc8] sm:$0xff]
        %v257 = vld [vmem:[#allocation5 + $0xd0] sm:$0xff]
        %v258 = vld [vmem:[#allocation5 + $0xd8] sm:$0xff]
        %v259 = vld [vmem:[#allocation5 + $0xe0] sm:$0xff]
        %v260 = vld [vmem:[#allocation5 + $0xe8] sm:$0xff]
        %v261 = vld [vmem:[#allocation5 + $0xf0] sm:$0xff]
        %v262 = vld [vmem:[#allocation5 + $0xf8] sm:$0xff]
        %v263 = vld [vmem:[%s2] sm:$0x1]
        %v265 = vlaneseq
        %v266 = vshrl.u32 %v265, 7
        %v267 = vsub.s32 0, %v266
        %v268 = vrot.slane %v263, %v267
        %270 = vmatprep.subr.mxu0 0.0
        %271 = vmatpush1.msra.mxu0 %v231
        %272 = vmatprep.subr.mxu0 0.0
        %273 = vmatpush1.msra.mxu0 %v232
        %274 = vmatprep.subr.mxu0 0.0
        %275 = vmatpush1.msra.mxu0 %v233
        %276 = vmatprep.subr.mxu0 0.0
        %277 = vmatpush1.msra.mxu0 %v234
        %278 = vmatprep.subr.mxu0 0.0
        %279 = vmatpush1.msra.mxu0 %v235
        %280 = vmatprep.subr.mxu0 0.0
        %281 = vmatpush1.msra.mxu0 %v236
        %282 = vmatprep.subr.mxu0 0.0
        %283 = vmatpush1.msra.mxu0 %v237
        %284 = vmatprep.subr.mxu0 0.0
        %285 = vmatpush1.msra.mxu0 %v238
        %286 = vmatprep.subr.mxu0 0.0
        %287 = vmatpush1.msra.mxu0 %v239
        %288 = vmatprep.subr.mxu0 0.0
        %289 = vmatpush1.msra.mxu0 %v240
        %290 = vmatprep.subr.mxu0 0.0
        %291 = vmatpush1.msra.mxu0 %v241
        %292 = vmatprep.subr.mxu0 0.0
        %293 = vmatpush1.msra.mxu0 %v242
        %294 = vmatprep.subr.mxu0 0.0
        %295 = vmatpush1.msra.mxu0 %v243
        %296 = vmatprep.subr.mxu0 0.0
        %297 = vmatpush1.msra.mxu0 %v244
        %298 = vmatprep.subr.mxu0 0.0
        %299 = vmatpush1.msra.mxu0 %v245
        %300 = vmatprep.subr.mxu0 0.0
        %301 = vmatpush1.msra.mxu0 %v246
        %302 = vmatprep.subr.mxu0 0.0
        %303 = vmatpush1.msra.mxu0 %v247
        %304 = vmatprep.subr.mxu0 0.0
        %305 = vmatpush1.msra.mxu0 %v248
        %306 = vmatprep.subr.mxu0 0.0
        %307 = vmatpush1.msra.mxu0 %v249
        %308 = vmatprep.subr.mxu0 0.0
        %309 = vmatpush1.msra.mxu0 %v250
        %310 = vmatprep.subr.mxu0 0.0
        %311 = vmatpush1.msra.mxu0 %v251
        %312 = vmatprep.subr.mxu0 0.0
        %313 = vmatpush1.msra.mxu0 %v252
        %314 = vmatprep.subr.mxu0 0.0
        %315 = vmatpush1.msra.mxu0 %v253
        %316 = vmatprep.subr.mxu0 0.0
        %317 = vmatpush1.msra.mxu0 %v254
        %318 = vmatprep.subr.mxu0 0.0
        %319 = vmatpush1.msra.mxu0 %v255
        %320 = vmatprep.subr.mxu0 0.0
        %321 = vmatpush1.msra.mxu0 %v256
        %322 = vmatprep.subr.mxu0 0.0
        %323 = vmatpush1.msra.mxu0 %v257
        %324 = vmatprep.subr.mxu0 0.0
        %325 = vmatpush1.msra.mxu0 %v258
        %326 = vmatprep.subr.mxu0 0.0
        %327 = vmatpush1.msra.mxu0 %v259
        %328 = vmatprep.subr.mxu0 0.0
        %329 = vmatpush1.msra.mxu0 %v260
        %330 = vmatprep.subr.mxu0 0.0
        %331 = vmatpush1.msra.mxu0 %v261
        %332 = vmatprep.subr.mxu0 0.0
        %333 = vmatpush1.msra.mxu0 %v262
        %334 = vmatprep.mubr.f32.mxu0 %v224
        %335 = vmatmul.mubr.f32.gmra.mrb[0].mxu0 %v223
        %v336 = vpop.f32.mrb[0].mxu0
        %v337 = vadd.f32 %v268, %v336
        %v338 = vpop.f32.mrb[0].mxu0
        %339 = vmatprep.mubr.f32.mxu0 %v226
        %340 = vmatmul.mubr.f32.gmra.mrb[0].mxu0 %v225
        %v341 = vpop.f32.mrb[0].mxu0
        %v342 = vadd.f32 %v268, %v341
        %v343 = vpop.f32.mrb[0].mxu0
        %344 = vmatprep.mubr.f32.mxu0 %v228
        %345 = vmatmul.mubr.f32.gmra.mrb[0].mxu0 %v227
        %v346 = vpop.f32.mrb[0].mxu0
        %v347 = vadd.f32 %v268, %v346
        %v348 = vpop.f32.mrb[0].mxu0
        %349 = vmatprep.mubr.f32.mxu0 %v230
        %350 = vmatmul.mubr.f32.gmra.mrb[0].mxu0 %v229
        %v351 = vpop.f32.mrb[0].mxu0
        %v352 = vadd.f32 %v268, %v351
        %v353 = vpop.f32.mrb[0].mxu0
        %354 = vdwg.mxu0
        %355 = vst [vmem:[%s211] sm:$0xff] %v337
        %356 = vst [vmem:[%s211 + $0x8] sm:$0xff] %v342
        %357 = vst [vmem:[%s211 + $0x10] sm:$0xff] %v347
        %358 = vst [vmem:[%s211 + $0x18] sm:$0xff] %v352
        %s359 = sand.u32 %s97, 1
        %s360 = scalar_lea.sflag [#allocation4], %s359
        %s361 = sand.u32 %s97, 1
        %s362 = smul.addr %s361, 32
        %s363 = scalar_lea.vmem [#allocation7], %s362
        // Predicated region
        $region41: #{tpu_custom_call.1} parent=31 // pred_check
          %p364 = pneg %p107
        $region42: #{tpu_custom_call.1} parent=31 // pred_check_branch
          %366 = sbr.rel (%p364) target = $region44
        $region43: #{tpu_custom_call.1} parent=31 // pred_region
          %s367 = smul.u32 4, %s21
          %s368 = ssub.s32 7, %s367
          %p369 = scmp.lt.s32.totalorder %s368, 4
          %s370 = scalar_select %p369, %s368, 4
          %s371 = smul.u32 128, %s370
          %s373 = ssub.s32 512, %s371
          %374 = vsyncadd %s360, %s373
          %p375 = scmp.ne.s32.totalorder 0, %s371
          %s376 = smul.addr %s367, 128
          %s377 = scalar_lea.hbm %s3, %s376
          %s378 = smul.u32 8, %s370
          %s379 = sshll.u32 %s363, 4
          %s380 = int_to_ptr.vmem [resolvable:$true] %s379
          %s381 = sshll.u32 %s378, 4
          %385 = dma.vmem_to_hbm [thread:$0]  (%p375), %s380, %s381, %s377, %s360, 128, 128, 8
        $region44: #{tpu_custom_call.1} parent=31 // pred_fallthru
          _
      $region32: #{tpu_custom_call.1} parent=5 // pred_fallthru
        _
      %p386 = scmp.le.s32.totalorder 2, %s16
      // Predicated region
      $region45: #{tpu_custom_call.1} parent=5 // pred_check
        %p387 = pneg %p386
      $region46: #{tpu_custom_call.1} parent=5 // pred_check_branch
        %389 = sbr.rel (%p387) target = $region48
      $region47: #{tpu_custom_call.1} parent=5 // pred_region
        %s390 = ssub.s32 %s16, 2
        // Predicated region
        $region49: #{tpu_custom_call.1} parent=47 // pred_check
          %p391 = pneg %p113
        $region50: #{tpu_custom_call.1} parent=47 // pred_check_branch
          %393 = sbr.rel (%p391) target = $region52
        $region51: #{tpu_custom_call.1} parent=47 // pred_region
          %s394 = sand.u32 %s98, 1
          %s395 = scalar_lea.sflag [#allocation4], %s394
          %s396 = sand.u32 %s98, 1
          %s397 = smul.addr %s396, 32
          %s398 = scalar_lea.vmem [#allocation7], %s397
          %399 = dma.done %s395, 512
        $region52: #{tpu_custom_call.1} parent=47 // pred_fallthru
          _
      $region48: #{tpu_custom_call.1} parent=5 // pred_fallthru
        _
    $region6: #{tpu_custom_call.1} parent=1 // loop_footer
      %s20 = sadd.s32 1, %s16
    $region7: #{tpu_custom_call.1} parent=1 // loop_footer_branch
      %15 = sbr.rel target = $region3
    $region8: #{tpu_custom_call.1} parent=1 // loop_exit
      _
    %400 = vsyncpa [#allocation3], 1
    %s401 = scalar_lea.sflag [#allocation3], 1
    %402 = vsyncpa %s401, 1
    %403 = vsyncpa [#allocation6], 1
    %404 = vsyncpa [#allocation4], 1
    %s405 = scalar_lea.sflag [#allocation4], 1
    %406 = vsyncpa %s405, 1

</llo_original>
